<compile_context>
chip_gen: v7x
topology: tpu7x:2x2x1
jax: 0.10.0
libtpu: 0.0.40
codegen_flags: <defaults>
</compile_context>

<pallas_src>
import functools

import numpy as np
import jax
import jax.numpy as jnp
from jax.experimental import pallas as pl
from jax.experimental.pallas import tpu as pltpu


# ------------------------------- helpers ------------------------------------

def _round_up(x, m):
    return ((x + m - 1) // m) * m


def _vmem_capacity_bytes():
    try:
        return int(pltpu.get_tpu_info().vmem_capacity_bytes)
    except Exception:
        return 64 * 1024 * 1024          # conservative default (v7x per-TC VMEM)


def _paths_for_chip():
    """Preferred matmul input-dtype paths for the local chip, most specific first."""
    kind = ""
    try:
        kind = jax.devices()[0].device_kind.lower()
    except Exception:
        pass
    if "v7" in kind:
        return ("fp8", "bf16cast")        # v7x MXU: fp8, no integer path
    if "v5" in kind or "v6" in kind:
        return ("int8", "bf16cast")       # v5e/v6e MXU: native int8 path
    return ("bf16cast",)                  # unknown / older chips: per-tile bf16 cast


def _path_dtypes(path):
    if path == "int8":
        return jnp.int8, jnp.int32, None             # in_dtype, acc_dtype, in-kernel cast
    if path == "fp8":
        return jnp.float8_e4m3fn, jnp.float32, None
    return jnp.int8, jnp.float32, jnp.bfloat16       # "bf16cast" fallback


def _pick_tk(np_pad, nt_pad, hw, in_itemsize, cast_dtype, vmem_bytes):
    """Contraction (HW) tile: multiple of 128, sized so the double-buffered input tiles
    (+ bf16 temporaries on the fallback path) fit in ~half of VMEM, capped at 32768."""
    hw_r = _round_up(hw, 128)
    per_k = (np_pad + nt_pad) * in_itemsize * 2      # 2 pipeline buffers per input
    if cast_dtype is not None:
        per_k += (np_pad + nt_pad) * np.dtype(cast_dtype).itemsize
    budget = max(int(vmem_bytes) // 2, 1 << 20)
    tk = (budget // max(per_k, 1)) // 128 * 128
    return max(128, min(tk, 32768, hw_r))


# ----------------------------- Pallas kernel --------------------------------

def _iou_cost_kernel(p_ref, t_ref, o_ref, acc_ref, *,
                     hw, nk, rem, ones_row, ones_col, cast_dtype):
    # p_ref  : (1, Np_pad, tk)     predictions (+ all-ones row at `ones_row`)
    # t_ref  : (1, tk, Nt_pad)     targets^T   (+ all-ones col at `ones_col`)
    # o_ref  : (1, Np_pad, Nt_pad) f32 transposed IoU cost
    # acc_ref: (Np_pad, Nt_pad)    int32/f32 <pred, target>; the ones row/col carry
    #                              |target| / |pred| for free on the MXU.
    k = pl.program_id(1)

    @pl.when(k == 0)
    def _init():
        acc_ref[...] = jnp.zeros_like(acc_ref)

    p = p_ref[0]
    t = t_ref[0]

    if rem != 0:
        # HW is not a multiple of tk: zero the out-of-range rows of the (small) rhs tile
        # on the last K step.  That alone makes every accumulated term exact, because
        # garbage lhs columns are multiplied by zeroed rhs rows.
        valid = jnp.where(k == nk - 1, rem, t.shape[0])
        keep = jax.lax.broadcasted_iota(jnp.int32, t.shape, 0) < valid
        if t.dtype == jnp.int8:
            t = jnp.where(keep, t, jnp.zeros_like(t))
        else:  # fp8: mask in int8 bit-space (zero bits == 0.0) to avoid an fp8 select
            bits = pltpu.bitcast(t, jnp.int8)
            bits = jnp.where(keep, bits, jnp.zeros_like(bits))
            t = pltpu.bitcast(bits, t.dtype)

    if cast_dtype is not None:           # universal fallback path only
        p = p.astype(cast_dtype)
        t = t.astype(cast_dtype)

    acc_ref[...] += jax.lax.dot_general(
        p, t, (((1,), (0,)), ((), ())),
        preferred_element_type=acc_ref.dtype)

    @pl.when(k == nk - 1)
    def _finalize():
        s = acc_ref[...]
        hw_c = jnp.asarray(hw, dtype=s.dtype)
        sp = s[:, ones_col:ones_col + 1]             # (Np_pad, 1)  |pred_j|
        st = s[ones_row:ones_row + 1, :]             # (1, Nt_pad)  |target_i|
        # ((HW - |t|) - |p|) + 2*<p,t> keeps every f32 intermediate < 2**24 (exact);
        # fully exact in int32 on the int8 path.
        eq = ((hw_c - st) - sp) + 2 * s              # sum(pred == target)
        orr = (st + sp) - s                          # sum(pred |  target)
        o_ref[0] = eq.astype(jnp.float32) / orr.astype(jnp.float32)


# ------------------------------ wrapper --------------------------------------

@functools.partial(jax.jit, static_argnames=("path",))
def _iou_cost_impl(prediction, target, path):
    """prediction: [B, Np, H, W] bool, target: [B, Nt, H, W] bool -> [B, Nt, Np] f32."""
    B, Np_, H, W = prediction.shape
    _, Nt, _, _ = target.shape
    HW = H * W
    assert HW < (1 << 24), "exact counting requires HW < 2**24"

    in_dtype, acc_dtype, cast_dtype = _path_dtypes(path)
    in_itemsize = np.dtype(in_dtype).itemsize

    Np_pad = _round_up(Np_ + 1, 32)      # +1 ones row; 32 = int8/fp8 sublane packing
    Nt_pad = _round_up(Nt + 1, 32)       # +1 ones col; lane dim of rhs / output
    ones_row, ones_col = Np_, Nt

    vmem = _vmem_capacity_bytes()
    tk = _pick_tk(Np_pad, Nt_pad, HW, in_itemsize, cast_dtype, vmem)
    nk = (HW + tk - 1) // tk
    rem = HW % tk                        # 0 => no in-kernel masking code is generated

    # lhs: predictions stay in natural (B, Np, HW) layout; cast + Np pad + ones row fuse
    # into a single HBM pass.  No HW padding (the remainder is masked in-kernel).
    p_flat = prediction.reshape(B, Np_, HW).astype(in_dtype)
    p_lhs = jnp.concatenate(
        [p_flat,
         jnp.ones((B, 1, HW), in_dtype),                         # ones row -> |target|
         jnp.zeros((B, Np_pad - Np_ - 1, HW), in_dtype)], axis=1)

    # rhs: only the (small) target tensor is transposed, to (B, HW, Nt_pad).
    t_tr = jnp.transpose(target.reshape(B, Nt, HW).astype(in_dtype), (0, 2, 1))
    t_rhs = jnp.concatenate(
        [t_tr,
         jnp.ones((B, HW, 1), in_dtype),                         # ones col -> |pred|
         jnp.zeros((B, HW, Nt_pad - Nt - 1), in_dtype)], axis=2)

    kernel = functools.partial(
        _iou_cost_kernel, hw=HW, nk=nk, rem=rem,
        ones_row=ones_row, ones_col=ones_col, cast_dtype=cast_dtype)

    grid_spec = pltpu.PrefetchScalarGridSpec(
        num_scalar_prefetch=0,
        grid=(B, nk),                                            # reduction (HW) axis last
        in_specs=[
            pl.BlockSpec((1, Np_pad, tk), lambda b, k: (b, 0, k)),
            pl.BlockSpec((1, tk, Nt_pad), lambda b, k: (b, k, 0)),
        ],
        out_specs=pl.BlockSpec((1, Np_pad, Nt_pad), lambda b, k: (b, 0, 0)),
        scratch_shapes=[pltpu.VMEM((Np_pad, Nt_pad), acc_dtype)],
    )

    bytes_accessed = (B * (Np_pad + Nt_pad) * HW * in_itemsize
                      + B * Np_pad * Nt_pad * 4)
    out_t = pl.pallas_call(
        kernel,
        out_shape=jax.ShapeDtypeStruct((B, Np_pad, Nt_pad), jnp.float32),
        grid_spec=grid_spec,
        compiler_params=pltpu.CompilerParams(
            dimension_semantics=("parallel", "arbitrary"),
            vmem_limit_bytes=int(vmem * 3 // 4),
        ),
        cost_estimate=pl.CostEstimate(
            flops=2 * B * Np_pad * Nt_pad * HW,
            transcendentals=0,
            bytes_accessed=int(bytes_accessed)),
    )(p_lhs, t_rhs)
    # TODO(synk): when B == 1 on v7x (2 TCs), add a second "parallel" grid axis over
    # Np_pad blocks so both TensorCores have work.

    # out_t is the transposed (pred x target) cost; the real matrix is tiny.
    return jnp.transpose(out_t[:, :Np_, :Nt], (0, 2, 1))


_CHOSEN_PATH = [None]


def iou_cost_pallas(prediction, target):
    """[B, Np, H, W] x [B, Nt, H, W] bool -> [B, Nt, Np] f32 (reference iou_cost)."""
    paths = (_CHOSEN_PATH[0],) if _CHOSEN_PATH[0] else _paths_for_chip()
    last_err = None
    for path in paths:
        try:
            out = jax.block_until_ready(_iou_cost_impl(prediction, target, path))
            _CHOSEN_PATH[0] = path
            return out
        except Exception as e:           # e.g. a matmul dtype the local MXU cannot lower
            last_err = e
    raise last_err


# ----------------- host-side linear_sum_assignment (Hungarian) ---------------

def _hungarian_numpy(cost):
    """O(n^3) Hungarian (rows <= cols via transpose). Pure-numpy fallback for scipy."""
    cost = np.asarray(cost, dtype=np.float64)
    transposed = False
    if cost.shape[0] > cost.shape[1]:
        cost, transposed = cost.T, True
    n, m = cost.shape
    INF = 1e18
    u = np.zeros(n + 1)
    v = np.zeros(m + 1)
    p = np.zeros(m + 1, dtype=np.int64)
    way = np.zeros(m + 1, dtype=np.int64)
    for i in range(1, n + 1):
        p[0] = i
        j0 = 0
        minv = np.full(m + 1, INF)
        used = np.zeros(m + 1, dtype=bool)
        while True:
            used[j0] = True
            i0 = p[j0]
            delta, j1 = INF, -1
            for j in range(1, m + 1):
                if not used[j]:
                    cur = cost[i0 - 1, j - 1] - u[i0] - v[j]
                    if cur < minv[j]:
                        minv[j] = cur
                        way[j] = j0
                    if minv[j] < delta:
                        delta, j1 = minv[j], j
            for j in range(m + 1):
                if used[j]:
                    u[p[j]] += delta
                    v[j] -= delta
                else:
                    minv[j] -= delta
            j0 = j1
            if p[j0] == 0:
                break
        while True:
            j1 = way[j0]
            p[j0] = p[j1]
            j0 = j1
            if j0 == 0:
                break
    rows, cols = [], []
    for j in range(1, m + 1):
        if p[j] != 0:
            rows.append(p[j] - 1)
            cols.append(j - 1)
    rows, cols = np.array(rows), np.array(cols)
    order = np.argsort(rows)
    rows, cols = rows[order], cols[order]
    if transposed:
        rows, cols = cols, rows
        order = np.argsort(rows)
        rows, cols = rows[order], cols[order]
    return rows, cols


def _linear_sum_assignment(cm):
    try:
        from scipy.optimize import linear_sum_assignment  # same as the reference
        return linear_sum_assignment(cm)
    except Exception:
        return _hungarian_numpy(cm)


# ------------------------------ matcher forward ------------------------------

def hungarian_matcher_forward(prediction, target):
    """Replicates HungarianMatcher.forward: list of [K, 3] arrays (row, col, iou_cost)."""
    cost_matrix = iou_cost_pallas(prediction, target)           # [B, Nt, Np] on TPU
    cost_np = np.asarray(jax.device_get(cost_matrix))
    matches = []
    for b in range(cost_np.shape[0]):
        cm = 1.0 - cost_np[b]
        # Guard degenerate empty-mask pairs (0/0 in the reference) before the LAP only.
        cm = np.nan_to_num(cm, nan=1.0, posinf=1e6, neginf=-1e6)
        rows, cols = _linear_sum_assignment(cm)   # TODO(synk): Hungarian LAP stays host-side (reference: cm.cpu().numpy())
        costs = cost_np[b][rows, cols]
        matches.append(
            np.stack([rows.astype(np.float32), cols.astype(np.float32),
                      costs.astype(np.float32)], axis=1))
    return matches, cost_matrix


# ----------------------------------- main ------------------------------------

if __name__ == "__main__":
    B, Np_, Nt, H, W = 2, 8, 8, 16, 16

    key = jax.random.PRNGKey(0)
    kp, kt = jax.random.split(key)
    prediction = jax.random.bernoulli(kp, 0.3, (B, Np_, H, W))   # bool masks
    target = jax.random.bernoulli(kt, 0.3, (B, Nt, H, W))        # bool masks

    matches, cost_matrix = hungarian_matcher_forward(prediction, target)
    cost_matrix = jax.block_until_ready(cost_matrix)

    # numpy reference for iou_cost (exact PyTorch semantics)
    pred_np = np.asarray(prediction, dtype=bool)
    targ_np = np.asarray(target, dtype=bool)
    eq = (pred_np[:, None] == targ_np[:, :, None]).sum(axis=(3, 4)).astype(np.float64)
    orr = (pred_np[:, None] | targ_np[:, :, None]).sum(axis=(3, 4)).astype(np.float64)
    ref_cost = (eq / orr).astype(np.float32)

    np.testing.assert_allclose(np.asarray(cost_matrix), ref_cost, rtol=1e-5, atol=1e-5)
    assert len(matches) == B and all(m.shape == (min(Nt, Np_), 3) for m in matches)

    print("KERNEL_OK")
</pallas_src>

<mosaic_0001>
module attributes {stable_mosaic.version = 11 : i64} {
  func.func @_iou_cost_kernel(%arg0: i32, %arg1: i32, %arg2: memref<1x32x256xi8, #tpu.memory_space<vmem>>, %arg3: memref<1x256x32xi8, #tpu.memory_space<vmem>>, %arg4: memref<1x32x32xf32, #tpu.memory_space<vmem>>, %arg5: memref<32x32xf32, #tpu.memory_space<vmem>>) attributes {dimension_semantics = [#tpu.dimension_semantics<parallel>, #tpu.dimension_semantics<arbitrary>], iteration_bounds = array<i64: 2, 1>, scalar_prefetch = 0 : i64, scratch_operands = 1 : i64, tpu.core_type = #tpu.core_type<tc>, window_params = [{transform_indices = @transform_0, window_bounds = array<i64: 1, 32, 256>}, {transform_indices = @transform_1, window_bounds = array<i64: 1, 256, 32>}, {transform_indices = @transform_2, window_bounds = array<i64: 1, 32, 32>}]} {
    %c0_i32 = arith.constant 0 : i32
    %0 = arith.cmpi eq, %arg1, %c0_i32 : i32
    %1 = arith.extui %0 : i1 to i32
    %c0_i32_0 = arith.constant 0 : i32
    %2 = arith.cmpi ne, %1, %c0_i32_0 : i32
    scf.if %2 {
      %cst_12 = arith.constant 0.000000e+00 : f32
      %16 = vector.broadcast %cst_12 : f32 to vector<32x32xf32>
      %c0_13 = arith.constant 0 : index
      %c0_14 = arith.constant 0 : index
      %17 = vector.load %arg5[%c0_13, %c0_14] : memref<32x32xf32, #tpu.memory_space<vmem>>, vector<32x32xf32>
      tpu.vector_store %arg5[%c0_13, %c0_14], %16 {strides = array<i32>} : memref<32x32xf32, #tpu.memory_space<vmem>>, vector<32x32xf32>,
    } else {
    }
    %c0 = arith.constant 0 : index
    %c0_1 = arith.constant 0 : index
    %c0_2 = arith.constant 0 : index
    %3 = vector.load %arg2[%c0, %c0_1, %c0_2] : memref<1x32x256xi8, #tpu.memory_space<vmem>>, vector<1x32x256xi8>
    %4 = vector.shape_cast %3 : vector<1x32x256xi8> to vector<32x256xi8>
    %c0_3 = arith.constant 0 : index
    %c0_4 = arith.constant 0 : index
    %c0_5 = arith.constant 0 : index
    %5 = vector.load %arg3[%c0_3, %c0_4, %c0_5] : memref<1x256x32xi8, #tpu.memory_space<vmem>>, vector<1x256x32xi8>
    %6 = vector.shape_cast %5 : vector<1x256x32xi8> to vector<256x32xi8>
    %7 = arith.sitofp %4 : vector<32x256xi8> to vector<32x256xbf16>
    %8 = arith.sitofp %6 : vector<256x32xi8> to vector<256x32xbf16>
    %c0_6 = arith.constant 0 : index
    %c0_7 = arith.constant 0 : index
    %9 = vector.load %arg5[%c0_6, %c0_7] : memref<32x32xf32, #tpu.memory_space<vmem>>, vector<32x32xf32>
    %cst = arith.constant dense<0.000000e+00> : vector<32x32xf32>
    %10 = tpu.matmul %7, %8, %cst {dimension_numbers = #tpu.dot_dimension_numbers<[1], [0], [0], [1], [0, 0, 1, 1], [], []>} : vector<32x256xbf16>, vector<256x32xbf16>, vector<32x32xf32> -> vector<32x32xf32>
    %11 = arith.addf %9, %10 : vector<32x32xf32>
    %c0_8 = arith.constant 0 : index
    %c0_9 = arith.constant 0 : index
    %12 = vector.load %arg5[%c0_8, %c0_9] : memref<32x32xf32, #tpu.memory_space<vmem>>, vector<32x32xf32>
    tpu.vector_store %arg5[%c0_8, %c0_9], %11 {strides = array<i32>} : memref<32x32xf32, #tpu.memory_space<vmem>>, vector<32x32xf32>,
    %c0_i32_10 = arith.constant 0 : i32
    %13 = arith.cmpi eq, %arg1, %c0_i32_10 : i32
    %14 = arith.extui %13 : i1 to i32
    %c0_i32_11 = arith.constant 0 : i32
    %15 = arith.cmpi ne, %14, %c0_i32_11 : i32
    scf.if %15 {
      %c0_12 = arith.constant 0 : index
      %c0_13 = arith.constant 0 : index
      %16 = vector.load %arg5[%c0_12, %c0_13] : memref<32x32xf32, #tpu.memory_space<vmem>>, vector<32x32xf32>
      %17 = vector.extract_strided_slice %16 {offsets = [0, 8], sizes = [32, 1], strides = [1, 1]} : vector<32x32xf32> to vector<32x1xf32>
      %18 = vector.extract_strided_slice %16 {offsets = [8, 0], sizes = [1, 32], strides = [1, 1]} : vector<32x32xf32> to vector<1x32xf32>
      %cst_14 = arith.constant 2.560000e+02 : f32
      %19 = vector.broadcast %cst_14 : f32 to vector<1x32xf32>
      %20 = arith.subf %19, %18 : vector<1x32xf32>
      %21 = vector.broadcast %20 : vector<1x32xf32> to vector<32x32xf32>
      %22 = vector.broadcast %17 : vector<32x1xf32> to vector<32x32xf32>
      %23 = arith.subf %21, %22 : vector<32x32xf32>
      %cst_15 = arith.constant 2.000000e+00 : f32
      %24 = vector.broadcast %cst_15 : f32 to vector<32x32xf32>
      %25 = arith.mulf %24, %16 : vector<32x32xf32>
      %26 = arith.addf %23, %25 : vector<32x32xf32>
      %27 = vector.broadcast %18 : vector<1x32xf32> to vector<32x32xf32>
      %28 = vector.broadcast %17 : vector<32x1xf32> to vector<32x32xf32>
      %29 = arith.addf %27, %28 : vector<32x32xf32>
      %30 = arith.subf %29, %16 : vector<32x32xf32>
      %31 = arith.divf %26, %30 : vector<32x32xf32>
      %c0_16 = arith.constant 0 : index
      %c0_17 = arith.constant 0 : index
      %c0_18 = arith.constant 0 : index
      %32 = vector.load %arg4[%c0_16, %c0_17, %c0_18] : memref<1x32x32xf32, #tpu.memory_space<vmem>>, vector<1x32x32xf32>
      %33 = vector.shape_cast %32 : vector<1x32x32xf32> to vector<32x32xf32>
      %34 = vector.shape_cast %31 : vector<32x32xf32> to vector<1x32x32xf32>
      tpu.vector_store %arg4[%c0_16, %c0_17, %c0_18], %34 {strides = array<i32>} : memref<1x32x32xf32, #tpu.memory_space<vmem>>, vector<1x32x32xf32>,
    } else {
    }
    return
  }
  func.func @transform_0(%arg0: i32, %arg1: i32) -> (i32, i32, i32) {
    %c0_i32 = arith.constant 0 : i32
    %c0_i32_0 = arith.constant 0 : i32
    return %arg0, %c0_i32, %arg1 : i32, i32, i32
  }
  func.func @transform_1(%arg0: i32, %arg1: i32) -> (i32, i32, i32) {
    %c0_i32 = arith.constant 0 : i32
    %c0_i32_0 = arith.constant 0 : i32
    return %arg0, %arg1, %c0_i32 : i32, i32, i32
  }
  func.func @transform_2(%arg0: i32, %arg1: i32) -> (i32, i32, i32) {
    %c0_i32 = arith.constant 0 : i32
    %c0_i32_0 = arith.constant 0 : i32
    %c0_i32_1 = arith.constant 0 : i32
    return %arg0, %c0_i32, %c0_i32_0 : i32, i32, i32
  }
}

</mosaic_0001>

<llo_original>
// kernel: _iou_cost_impl.1
$region0: #{_iou_cost_impl.1}
  #allocation0 [shape = 'u32[]', space=smem, size = 0x4, offset = 0x4, fixed_abs, tag = 'smem constant byte address 0x4 - core index']
  #allocation1 [shape = 'u32[144,128]{1,0:T(1,128)}', space=vmem, size = 0x12000, scoped, tag = 'internal scratch']
  #allocation2 [shape = 'f32[32,32]{1,0:T(8,128)}', space=vmem, size = 0x4000, scoped, tag = 'scratch operand']
  %s0 = inlined_call_operand.vmem [shape: s8[2,32,256], index: 0, kind: input, shape index: {}]
  %s1 = inlined_call_operand.vmem [shape: s8[2,256,32], index: 1, kind: input, shape index: {}]
  %s2 = inlined_call_operand.vmem [shape: f32[2,32,32], index: 2, kind: output, shape index: {}]
  %s3 = sld [smem:[#allocation0]]
  $region49: #{_iou_cost_impl.1} parent=0
    _
  %s5 = ssub.s32 1, %s3
  %s6 = scalar_select 0, %s5, %s3
  loop: start=0, step=1, limit=4
  $region2: #{_iou_cost_impl.1} parent=0 // loop_pre_header
    _
  $region3: #{_iou_cost_impl.1} parent=0 // loop_header
    %s8 = sphi 0, %s12
    %p9 = scmp.ge.s32.totalorder %s8, 4
    %s15 = sphi 0, %s27
    %s16 = sphi 0, %s23
    %s17 = sphi 0, %s15
    %s18 = sphi 0, %s16
    %s19 = sphi 0, %s17
    %s20 = sphi 0, %s18
    %s32 = sphi 0, %s34
    %s35 = sphi 0, %s32
    %s36 = sphi 0, %s35
    %s52 = sphi 0, %s36
    %s60 = sphi 0, %s62
    %s63 = sphi 0, %s60
    %s64 = sphi 0, %s63
    %s80 = sphi 0, %s64
    %s86 = sphi 0, %s88
    %s89 = sphi 0, %s86
    %s90 = sphi 0, %s89
    %s106 = sphi 0, %s90
  $region4: #{_iou_cost_impl.1} parent=0 // loop_header_branch
    %11 = sbr.rel (%p9) target = $region8
  $region5: #{_iou_cost_impl.1} parent=0 // loop_body
    %s13 = ssub.s32 %s8, 1
    %s14 = ssub.s32 %s8, 2
    %s21 = sadd.s32 1, %s16
    %p22 = scmp.ge.s32.totalorder %s21, 1
    %s23 = scalar_select %p22, 0, %s21
    %s24 = sadd.s32 1, %s15
    %s25 = scalar_select %p22, %s24, %s15
    %p26 = scmp.ge.s32.totalorder %s25, 2
    %s27 = scalar_select %p26, 0, %s25
    %s28 = ssub.s32 %s15, %s27
    %s29 = ssub.s32 %s16, %s23
    %s30 = sor.u32 %s28, %s29
    %p31 = scmp.eq.s32.totalorder %s30, 0
    %s33 = sadd.s32 %s32, 1
    %s34 = scalar_select %p31, %s32, %s33
    %p37 = pneg %p31
    %p38 = scmp.eq.s32.totalorder %s8, 1
    %p39 = por %p37, %p38
    %p40 = scmp.ne.s32.totalorder %s32, %s35
    %p41 = scmp.eq.s32.totalorder %s8, 0
    %p42 = por %p40, %p41
    %p43 = scmp.ne.s32.totalorder %s32, %s35
    %p44 = scmp.eq.s32.totalorder %s13, 1
    %p45 = por %p43, %p44
    %p46 = scmp.ne.s32.totalorder %s35, %s36
    %p47 = scmp.eq.s32.totalorder %s13, 0
    %p48 = por %p46, %p47
    %p49 = scmp.ne.s32.totalorder %s35, %s36
    %p50 = scmp.eq.s32.totalorder %s14, 1
    %p51 = por %p49, %p50
    %p53 = scmp.ne.s32.totalorder %s36, %s52
    %p54 = scmp.eq.s32.totalorder %s14, 0
    %p55 = por %p53, %p54
    %s56 = ssub.s32 %s15, %s27
    %s57 = ssub.s32 %s16, %s23
    %s58 = sor.u32 %s56, %s57
    %p59 = scmp.eq.s32.totalorder %s58, 0
    %s61 = sadd.s32 %s60, 1
    %s62 = scalar_select %p59, %s60, %s61
    %p65 = pneg %p59
    %p66 = scmp.eq.s32.totalorder %s8, 1
    %p67 = por %p65, %p66
    %p68 = scmp.ne.s32.totalorder %s60, %s63
    %p69 = scmp.eq.s32.totalorder %s8, 0
    %p70 = por %p68, %p69
    %p71 = scmp.ne.s32.totalorder %s60, %s63
    %p72 = scmp.eq.s32.totalorder %s13, 1
    %p73 = por %p71, %p72
    %p74 = scmp.ne.s32.totalorder %s63, %s64
    %p75 = scmp.eq.s32.totalorder %s13, 0
    %p76 = por %p74, %p75
    %p77 = scmp.ne.s32.totalorder %s63, %s64
    %p78 = scmp.eq.s32.totalorder %s14, 1
    %p79 = por %p77, %p78
    %p81 = scmp.ne.s32.totalorder %s64, %s80
    %p82 = scmp.eq.s32.totalorder %s14, 0
    %p83 = por %p81, %p82
    %s84 = ssub.s32 %s15, %s27
    %p85 = scmp.eq.s32.totalorder %s84, 0
    %s87 = sadd.s32 %s86, 1
    %s88 = scalar_select %p85, %s86, %s87
    %p91 = pneg %p85
    %p92 = scmp.eq.s32.totalorder %s8, 1
    %p93 = por %p91, %p92
    %p94 = scmp.ne.s32.totalorder %s86, %s89
    %p95 = scmp.eq.s32.totalorder %s8, 0
    %p96 = por %p94, %p95
    %p97 = scmp.ne.s32.totalorder %s86, %s89
    %p98 = scmp.eq.s32.totalorder %s13, 1
    %p99 = por %p97, %p98
    %p100 = scmp.ne.s32.totalorder %s89, %s90
    %p101 = scmp.eq.s32.totalorder %s13, 0
    %p102 = por %p100, %p101
    %p103 = scmp.ne.s32.totalorder %s89, %s90
    %p104 = scmp.eq.s32.totalorder %s14, 1
    %p105 = por %p103, %p104
    %p107 = scmp.ne.s32.totalorder %s90, %s106
    %p108 = scmp.eq.s32.totalorder %s14, 0
    %p109 = por %p107, %p108
    %p110 = scmp.le.s32.totalorder 1, %s8
    %p111 = scmp.lt.s32.totalorder %s8, 3
    %p112 = pnand %p110, %p111
    %p113 = pneg %p112
    // Predicated region
    $region9: #{_iou_cost_impl.1} parent=5 // pred_check
      _
    $region10: #{_iou_cost_impl.1} parent=5 // pred_check_branch
      %115 = sbr.rel (%p112) target = $region12
    $region11: #{_iou_cost_impl.1} parent=5 // pred_region
      %s116 = ssub.s32 %s8, 1
    $region12: #{_iou_cost_impl.1} parent=5 // pred_fallthru
      _
    %p117 = scmp.lt.s32.totalorder %s8, 2
    // Predicated region
    $region13: #{_iou_cost_impl.1} parent=5 // pred_check
      %p118 = pneg %p117
    $region14: #{_iou_cost_impl.1} parent=5 // pred_check_branch
      %120 = sbr.rel (%p118) target = $region16
    $region15: #{_iou_cost_impl.1} parent=5 // pred_region
      // Predicated region
      $region17: #{_iou_cost_impl.1} parent=15 // pred_check
        %p121 = pneg %p42
      $region18: #{_iou_cost_impl.1} parent=15 // pred_check_branch
        %123 = sbr.rel (%p121) target = $region20
      $region19: #{_iou_cost_impl.1} parent=15 // pred_region
        %s124 = smul.u32 2, %s16
        %p125 = scmp.lt.s32.totalorder %s15, 1
        %s126 = scalar_select %p125, %s15, 1
        %p127 = scmp.lt.s32.totalorder %s124, 1
        %s128 = scalar_select %p127, %s124, 1
        %s129 = smul.addr %s126, 2
        %s130 = sadd.s32 %s128, %s129
        %s131 = smul.addr %s130, 8
        %s132 = scalar_lea.vmem %s0, %s131
        %s133 = smul.u32 2, %s16
      $region20: #{_iou_cost_impl.1} parent=15 // pred_fallthru
        _
      // Predicated region
      $region21: #{_iou_cost_impl.1} parent=15 // pred_check
        %p134 = pneg %p70
      $region22: #{_iou_cost_impl.1} parent=15 // pred_check_branch
        %136 = sbr.rel (%p134) target = $region24
      $region23: #{_iou_cost_impl.1} parent=15 // pred_region
        %s137 = smul.u32 8, %s16
        %p138 = scmp.lt.s32.totalorder %s15, 1
        %s139 = scalar_select %p138, %s15, 1
        %p140 = scmp.lt.s32.totalorder %s137, 7
        %s141 = scalar_select %p140, %s137, 7
        %s142 = smul.addr %s139, 8
        %s143 = sadd.s32 %s141, %s142
        %s144 = smul.addr %s143, 8
        %s145 = scalar_lea.vmem %s1, %s144
        %s146 = smul.u32 8, %s16
      $region24: #{_iou_cost_impl.1} parent=15 // pred_fallthru
        _
    $region16: #{_iou_cost_impl.1} parent=5 // pred_fallthru
      _
    %p147 = scmp.le.s32.totalorder 1, %s8
    %p148 = scmp.lt.s32.totalorder %s8, 3
    %p149 = pnand %p147, %p148
    %p150 = pneg %p149
    // Predicated region
    $region25: #{_iou_cost_impl.1} parent=5 // pred_check
      _
    $region26: #{_iou_cost_impl.1} parent=5 // pred_check_branch
      %152 = sbr.rel (%p149) target = $region28
    $region27: #{_iou_cost_impl.1} parent=5 // pred_region
      %s153 = ssub.s32 %s8, 1
      %s154 = smul.u32 2, %s18
      %p155 = scmp.lt.s32.totalorder %s17, 1
      %s156 = scalar_select %p155, %s17, 1
      %p157 = scmp.lt.s32.totalorder %s154, 1
      %s158 = scalar_select %p157, %s154, 1
      %s159 = smul.addr %s156, 2
      %s160 = sadd.s32 %s158, %s159
      %s161 = smul.addr %s160, 8
      %s162 = scalar_lea.vmem %s0, %s161
      %p163 = pneg %p48
      %p164 = pneg %p45
      %s165 = smul.u32 8, %s18
      %p166 = scmp.lt.s32.totalorder %s17, 1
      %s167 = scalar_select %p166, %s17, 1
      %p168 = scmp.lt.s32.totalorder %s165, 7
      %s169 = scalar_select %p168, %s165, 7
      %s170 = smul.addr %s167, 8
      %s171 = sadd.s32 %s169, %s170
      %s172 = smul.addr %s171, 8
      %s173 = scalar_lea.vmem %s1, %s172
      %p174 = pneg %p76
      %p175 = pneg %p73
      %p176 = pneg %p102
      %p177 = pneg %p99
      %p178 = scmp.lt.s32.totalorder %s17, 1
      %s179 = scalar_select %p178, %s17, 1
      %s180 = smul.addr %s179, 4
      %s181 = smul.addr %s180, 8
      %s182 = scalar_lea.vmem %s2, %s181
      %s183 = smul.u32 2, %s18
      %p184 = scmp.lt.s32.totalorder %s17, 1
      %s185 = scalar_select %p184, %s17, 1
      %p186 = scmp.lt.s32.totalorder %s183, 1
      %s187 = scalar_select %p186, %s183, 1
      %s188 = smul.addr %s185, 2
      %s189 = sadd.s32 %s187, %s188
      %s190 = smul.addr %s189, 8
      %s191 = scalar_lea.vmem %s0, %s190
      %s192 = smul.u32 2, %s18
      %s193 = smul.u32 8, %s18
      %p194 = scmp.lt.s32.totalorder %s17, 1
      %s195 = scalar_select %p194, %s17, 1
      %p196 = scmp.lt.s32.totalorder %s193, 7
      %s197 = scalar_select %p196, %s193, 7
      %s198 = smul.addr %s195, 8
      %s199 = sadd.s32 %s197, %s198
      %s200 = smul.addr %s199, 8
      %s201 = scalar_lea.vmem %s1, %s200
      %s202 = smul.u32 8, %s18
      %p203 = scmp.lt.s32.totalorder %s17, 1
      %s204 = scalar_select %p203, %s17, 1
      %s205 = smul.addr %s204, 4
      %s206 = smul.addr %s205, 8
      %s207 = scalar_lea.vmem %s2, %s206
      %p209 = scmp.eq.s32.totalorder %s18, 0
      // Predicated region
      $region29: #{_iou_cost_impl.1} parent=27 // pred_check
        %p210 = pneg %p209
      $region30: #{_iou_cost_impl.1} parent=27 // pred_check_branch
        %212 = sbr.rel (%p210) target = $region32
      $region31: #{_iou_cost_impl.1} parent=27 // pred_region
        %vm213 = vcmask 261120
        %214 = vst.msk [vmem:[#allocation2] sm:$0xff] %vm213, 0.0
        %215 = vst.msk [vmem:[#allocation2 + $0x8] sm:$0xff] %vm213, 0.0
        %216 = vst.msk [vmem:[#allocation2 + $0x10] sm:$0xff] %vm213, 0.0
        %217 = vst.msk [vmem:[#allocation2 + $0x18] sm:$0xff] %vm213, 0.0
      $region32: #{_iou_cost_impl.1} parent=27 // pred_fallthru
        _
      %v218 = vld [vmem:[%s191] sm:$0xff]
      %v219 = vld [vmem:[%s191 + $0x8] sm:$0xff]
      %v220 = vld [vmem:[%s201] sm:$0xff]
      %v221 = vld [vmem:[%s201 + $0x8] sm:$0xff]
      %v222 = vld [vmem:[%s201 + $0x10] sm:$0xff]
      %v223 = vld [vmem:[%s201 + $0x18] sm:$0xff]
      %v224 = vld [vmem:[%s201 + $0x20] sm:$0xff]
      %v225 = vld [vmem:[%s201 + $0x28] sm:$0xff]
      %v226 = vld [vmem:[%s201 + $0x30] sm:$0xff]
      %v227 = vld [vmem:[%s201 + $0x38] sm:$0xff]
      %v228 = vunpack.c.l.s8.bf16 %v218
      %v229 = vunpack.c.l.s8.bf16 %v219
      %v230 = vunpack.c.h.s8.bf16 %v218
      %v231 = vunpack.c.h.s8.bf16 %v219
      %v232 = vunpack.c.l.s8.bf16 %v220
      %v233 = vunpack.c.h.s8.bf16 %v220
      %v234 = vunpack.c.l.s8.bf16 %v221
      %v235 = vunpack.c.h.s8.bf16 %v221
      %v236 = vunpack.c.l.s8.bf16 %v222
      %v237 = vunpack.c.h.s8.bf16 %v222
      %v238 = vunpack.c.l.s8.bf16 %v223
      %v239 = vunpack.c.h.s8.bf16 %v223
      %v240 = vunpack.c.l.s8.bf16 %v224
      %v241 = vunpack.c.h.s8.bf16 %v224
      %v242 = vunpack.c.l.s8.bf16 %v225
      %v243 = vunpack.c.h.s8.bf16 %v225
      %v244 = vunpack.c.l.s8.bf16 %v226
      %v245 = vunpack.c.h.s8.bf16 %v226
      %v246 = vunpack.c.l.s8.bf16 %v227
      %v247 = vunpack.c.h.s8.bf16 %v227
      %v248 = vld [vmem:[#allocation2] sm:$0xff]
      %v249 = vld [vmem:[#allocation2 + $0x8] sm:$0xff]
      %v250 = vld [vmem:[#allocation2 + $0x10] sm:$0xff]
      %v251 = vld [vmem:[#allocation2 + $0x18] sm:$0xff]
      %252 = vmatprep.subr.bf16.mxu0 0
      %253 = vmatpush1.bf16.msra.mxu0 %v232
      %254 = vmatprep.subr.bf16.mxu0 0
      %255 = vmatpush1.bf16.msra.mxu0 %v233
      %256 = vmatprep.subr.bf16.mxu0 0
      %257 = vmatpush1.bf16.msra.mxu0 %v234
      %258 = vmatprep.subr.bf16.mxu0 0
      %259 = vmatpush1.bf16.msra.mxu0 %v235
      %260 = vmatprep.subr.bf16.mxu0 0
      %261 = vmatpush1.bf16.msra.mxu0 %v236
      %262 = vmatprep.subr.bf16.mxu0 0
      %263 = vmatpush1.bf16.msra.mxu0 %v237
      %264 = vmatprep.subr.bf16.mxu0 0
      %265 = vmatpush1.bf16.msra.mxu0 %v238
      %266 = vmatprep.subr.bf16.mxu0 0
      %267 = vmatpush1.bf16.msra.mxu0 %v239
      %268 = vmatprep.subr.bf16.mxu0 0
      %269 = vmatpush1.bf16.msra.mxu0 %v240
      %270 = vmatprep.subr.bf16.mxu0 0
      %271 = vmatpush1.bf16.msra.mxu0 %v241
      %272 = vmatprep.subr.bf16.mxu0 0
      %273 = vmatpush1.bf16.msra.mxu0 %v242
      %274 = vmatprep.subr.bf16.mxu0 0
      %275 = vmatpush1.bf16.msra.mxu0 %v243
      %276 = vmatprep.subr.bf16.mxu0 0
      %277 = vmatpush1.bf16.msra.mxu0 %v244
      %278 = vmatprep.subr.bf16.mxu0 0
      %279 = vmatpush1.bf16.msra.mxu0 %v245
      %280 = vmatprep.subr.bf16.mxu0 0
      %281 = vmatpush1.bf16.msra.mxu0 %v246
      %282 = vmatprep.subr.bf16.mxu0 0
      %283 = vmatpush1.bf16.msra.mxu0 %v247
      %284 = vmatprep.mubr.bf16.mxu0 %v229
      %285 = vmatmul.mubr.bf16.gmra.mrb[0].mxu0 %v228
      %v286 = vpop.f32.mrb[0].mxu0
      %v287 = vadd.f32 0.0, %v286
      %v288 = vpop.f32.mrb[0].mxu0
      %v289 = vpop.f32.mrb[0].mxu0
      %v290 = vadd.f32 0.0, %v289
      %v291 = vpop.f32.mrb[0].mxu0
      %292 = vmatprep.mubr.bf16.mxu0 %v231
      %293 = vmatmul.mubr.bf16.gmra.mrb[0].mxu0 %v230
      %v294 = vpop.f32.mrb[0].mxu0
      %v295 = vadd.f32 0.0, %v294
      %v296 = vpop.f32.mrb[0].mxu0
      %v297 = vpop.f32.mrb[0].mxu0
      %v298 = vadd.f32 0.0, %v297
      %v299 = vpop.f32.mrb[0].mxu0
      %300 = vdwg.mxu0
      %v301 = vadd.f32 %v248, %v287
      %v302 = vadd.f32 %v249, %v290
      %v303 = vadd.f32 %v250, %v295
      %v304 = vadd.f32 %v251, %v298
      %vm305 = vcmask 261120
      %306 = vst.msk [vmem:[#allocation2] sm:$0xff] %vm305, %v301
      %307 = vst.msk [vmem:[#allocation2 + $0x8] sm:$0xff] %vm305, %v302
      %308 = vst.msk [vmem:[#allocation2 + $0x10] sm:$0xff] %vm305, %v303
      %309 = vst.msk [vmem:[#allocation2 + $0x18] sm:$0xff] %vm305, %v304
      // Predicated region
      $region33: #{_iou_cost_impl.1} parent=27 // pred_check
        %p310 = pneg %p209
      $region34: #{_iou_cost_impl.1} parent=27 // pred_check_branch
        %312 = sbr.rel (%p310) target = $region36
      $region35: #{_iou_cost_impl.1} parent=27 // pred_region
        %v313 = vld [vmem:[#allocation2] sm:$0xff]
        %v314 = vld [vmem:[#allocation2 + $0x8] sm:$0xff]
        %v315 = vld [vmem:[#allocation2 + $0x10] sm:$0xff]
        %v316 = vld [vmem:[#allocation2 + $0x18] sm:$0xff]
        %v317 = vsub.f32 256.0, %v314
        %v318 = vlaneseq
        %v319 = vshrl.u32 %v318, 7
        %v320 = vsub.s32 0, %v319
        %v321 = vrot.slane %v317, %v320
        %323 = vset.pattern.permute.xlu0 8
        %324 = vperm.xlu0 %323, %v313
        %v325 = vpop.permute.xlu0 %324
        %328 = vset.pattern.permute.xlu0 8
        %329 = vperm.xlu0 %328, %v314
        %v330 = vpop.permute.xlu0 %329
        %333 = vset.pattern.permute.xlu0 8
        %334 = vperm.xlu0 %333, %v315
        %v335 = vpop.permute.xlu0 %334
        %338 = vset.pattern.permute.xlu0 8
        %339 = vperm.xlu0 %338, %v316
        %v340 = vpop.permute.xlu0 %339
        %v342 = vsub.f32 %v321, %v325
        %v343 = vsub.f32 %v321, %v330
        %v344 = vsub.f32 %v321, %v335
        %v345 = vsub.f32 %v321, %v340
        %v346 = vmul.f32 %v313, 2.0
        %v347 = vmul.f32 %v314, 2.0
        %v348 = vmul.f32 %v315, 2.0
        %v349 = vmul.f32 %v316, 2.0
        %v350 = vadd.f32 %v342, %v346
        %v351 = vadd.f32 %v343, %v347
        %v352 = vadd.f32 %v344, %v348
        %v353 = vadd.f32 %v345, %v349
        %v354 = vlaneseq
        %v355 = vshrl.u32 %v354, 7
        %v356 = vsub.s32 0, %v355
        %v357 = vrot.slane %v314, %v356
        %v358 = vadd.f32 %v357, %v325
        %v359 = vadd.f32 %v357, %v330
        %v360 = vadd.f32 %v357, %v335
        %v361 = vadd.f32 %v357, %v340
        %v362 = vsub.f32 %v358, %v313
        %v363 = vsub.f32 %v359, %v314
        %v364 = vsub.f32 %v360, %v315
        %v365 = vsub.f32 %v361, %v316
        %v366 = vrcp.pop %v362
        %v367 = vmul.f32 %v350, %v366
        %v368 = vrcp.pop %v363
        %v369 = vmul.f32 %v351, %v368
        %v370 = vrcp.pop %v364
        %v371 = vmul.f32 %v352, %v370
        %v372 = vrcp.pop %v365
        %v373 = vmul.f32 %v353, %v372
        %374 = vst.msk [vmem:[%s207] sm:$0xff] %vm305, %v367
        %375 = vst.msk [vmem:[%s207 + $0x8] sm:$0xff] %vm305, %v369
        %376 = vst.msk [vmem:[%s207 + $0x10] sm:$0xff] %vm305, %v371
        %377 = vst.msk [vmem:[%s207 + $0x18] sm:$0xff] %vm305, %v373
      $region36: #{_iou_cost_impl.1} parent=27 // pred_fallthru
        _
      %p378 = scmp.lt.s32.totalorder %s17, 1
      %s379 = scalar_select %p378, %s17, 1
      %s380 = smul.addr %s379, 4
      %s381 = smul.addr %s380, 8
      %s382 = scalar_lea.vmem %s2, %s381
      // Predicated region
      $region37: #{_iou_cost_impl.1} parent=27 // pred_check
        %p383 = pneg %p99
      $region38: #{_iou_cost_impl.1} parent=27 // pred_check_branch
        %385 = sbr.rel (%p383) target = $region40
      $region39: #{_iou_cost_impl.1} parent=27 // pred_region
        _
      $region40: #{_iou_cost_impl.1} parent=27 // pred_fallthru
        _
    $region28: #{_iou_cost_impl.1} parent=5 // pred_fallthru
      _
    %p386 = scmp.le.s32.totalorder 2, %s8
    // Predicated region
    $region41: #{_iou_cost_impl.1} parent=5 // pred_check
      %p387 = pneg %p386
    $region42: #{_iou_cost_impl.1} parent=5 // pred_check_branch
      %389 = sbr.rel (%p387) target = $region44
    $region43: #{_iou_cost_impl.1} parent=5 // pred_region
      %s390 = ssub.s32 %s8, 2
      // Predicated region
      $region45: #{_iou_cost_impl.1} parent=43 // pred_check
        %p391 = pneg %p105
      $region46: #{_iou_cost_impl.1} parent=43 // pred_check_branch
        %393 = sbr.rel (%p391) target = $region48
      $region47: #{_iou_cost_impl.1} parent=43 // pred_region
        %p394 = scmp.lt.s32.totalorder %s19, 1
        %s395 = scalar_select %p394, %s19, 1
        %s396 = smul.addr %s395, 4
        %s397 = smul.addr %s396, 8
        %s398 = scalar_lea.vmem %s2, %s397
      $region48: #{_iou_cost_impl.1} parent=43 // pred_fallthru
        _
    $region44: #{_iou_cost_impl.1} parent=5 // pred_fallthru
      _
  $region6: #{_iou_cost_impl.1} parent=0 // loop_footer
    %s12 = sadd.s32 1, %s8
  $region7: #{_iou_cost_impl.1} parent=0 // loop_footer_branch
    %7 = sbr.rel target = $region3
  $region8: #{_iou_cost_impl.1} parent=0 // loop_exit
    _

</llo_original>
